<compile_context>
chip_gen: v7x
topology: tpu7x:2x2x1
jax: 0.10.0
libtpu: 0.0.40
codegen_flags: <defaults>
</compile_context>

<pallas_src>
import functools

import jax
import jax.numpy as jnp
from jax.experimental import pallas as pl
from jax.experimental.pallas import tpu as pltpu

LANE = 128  # full-vreg lane width


def _mlp_kernel(x_ref, p_ref, o_ref, *, n_hidden):
    """x_ref: (1, Npad) VMEM; p_ref: (3*H + 1,) SMEM flat params; o_ref: (1, Npad)."""
    x = x_ref[...]                                   # (1, Npad) batch on lanes
    acc = jnp.zeros_like(x)
    # y = sum_h w2[h] * relu(w1[h] * x + b1[h]); fully unrolled scalar broadcasts.
    for h in range(n_hidden):
        w1_h = p_ref[h]                              # scalar from SMEM
        b1_h = p_ref[n_hidden + h]
        w2_h = p_ref[2 * n_hidden + h]
        acc = acc + w2_h * jnp.maximum(w1_h * x + b1_h, 0.0)
    o_ref[...] = (acc + p_ref[3 * n_hidden]).astype(o_ref.dtype)


def pack_params(w1, b1, w2, b2):
    """Flatten (1,H), (1,H), (H,1), (1,1) params into one flat (3H+1,) f32 array."""
    return jnp.concatenate(
        [w1.reshape(-1), b1.reshape(-1), w2.reshape(-1), b2.reshape(-1)]
    ).astype(jnp.float32)


def net_forward_lanes(x_lane, params_flat, n_hidden):
    """Forward pass, batch-on-lanes layout.

    x_lane      : (1, N) float32 — N samples of the scalar feature on the lane axis.
    params_flat : (3*n_hidden + 1,) float32 — [w1 (H), b1 (H), w2 (H), b2 (1)].
    returns     : (1, N) float32
    """
    _, n = x_lane.shape
    n_pad = max(LANE, pl.cdiv(n, LANE) * LANE)

    if n_pad != n:
        # Zero-fill padded lanes; they are sliced off before anything consumes them.
        x_pad = jnp.zeros((1, n_pad), x_lane.dtype).at[:, :n].set(x_lane)
    else:
        x_pad = x_lane

    kernel = functools.partial(_mlp_kernel, n_hidden=n_hidden)
    cost = pl.CostEstimate(
        flops=5 * n_pad * n_hidden,
        transcendentals=0,
        bytes_accessed=(2 * n_pad + 3 * n_hidden + 1) * 4,
    )

    out = pl.pallas_call(
        kernel,
        out_shape=jax.ShapeDtypeStruct((1, n_pad), x_lane.dtype),
        in_specs=[
            pl.BlockSpec((1, n_pad), lambda: (0, 0)),                 # x  (VMEM, 1 vreg)
            pl.BlockSpec(memory_space=pltpu.MemorySpace.SMEM),        # flat params (SMEM)
        ],
        out_specs=pl.BlockSpec((1, n_pad), lambda: (0, 0)),
        cost_estimate=cost,
    )(x_pad, params_flat)

    return out[:, :n]


def init_params(key, n_feature, n_hidden, n_output):
    """Deterministic init mimicking torch.nn.Linear's uniform(-1/sqrt(fan_in), ...)."""
    k1, k2, k3, k4 = jax.random.split(key, 4)
    bound1 = 1.0 / jnp.sqrt(jnp.float32(n_feature))
    bound2 = 1.0 / jnp.sqrt(jnp.float32(n_hidden))
    # Stored already transposed: (in, out)
    w1 = jax.random.uniform(k1, (n_feature, n_hidden), jnp.float32, -bound1, bound1)
    b1 = jax.random.uniform(k2, (1, n_hidden), jnp.float32, -bound1, bound1)
    w2 = jax.random.uniform(k3, (n_hidden, n_output), jnp.float32, -bound2, bound2)
    b2 = jax.random.uniform(k4, (1, n_output), jnp.float32, -bound2, bound2)
    return w1, b1, w2, b2


if __name__ == "__main__":
    n_feature, n_hidden, n_output = 1, 10, 1
    n = 100

    # Same data as the tutorial: linspace(-1, 1, 100), kept batch-on-lanes (1, N)
    # end-to-end so no (N,1)<->(1,N) relayout HLOs surround the kernel.
    x_lane = jnp.linspace(-1.0, 1.0, n, dtype=jnp.float32).reshape(1, n)

    key = jax.random.PRNGKey(0)
    w1, b1, w2, b2 = init_params(key, n_feature, n_hidden, n_output)
    params_flat = pack_params(w1, b1, w2, b2)

    out = net_forward_lanes(x_lane, params_flat, n_hidden)
    out = jax.block_until_ready(out)

    # Pure-JAX reference check of the original (N,1) module semantics.
    x_col = x_lane.reshape(n, 1)
    ref = jnp.maximum(x_col @ w1 + b1, 0.0) @ w2 + b2          # (N, 1)
    assert out.shape == (1, n)
    assert jnp.allclose(out, ref.reshape(1, n), atol=1e-5, rtol=1e-5)

    print("KERNEL_OK")
</pallas_src>

<mosaic_0001>
module attributes {stable_mosaic.version = 11 : i64} {
  func.func @_mlp_kernel(%arg0: memref<1x128xf32, #tpu.memory_space<vmem>>, %arg1: memref<31xf32, #tpu.memory_space<smem>>, %arg2: memref<1x128xf32, #tpu.memory_space<vmem>>) attributes {dimension_semantics = [], scalar_prefetch = 0 : i64, scratch_operands = 0 : i64, tpu.core_type = #tpu.core_type<tc>} {
    %c0 = arith.constant 0 : index
    %c0_0 = arith.constant 0 : index
    %0 = vector.load %arg0[%c0, %c0_0] : memref<1x128xf32, #tpu.memory_space<vmem>>, vector<1x128xf32>
    %cst = arith.constant 0.000000e+00 : f32
    %1 = vector.broadcast %cst : f32 to vector<1x128xf32>
    %c0_1 = arith.constant 0 : index
    %2 = memref.load %arg1[%c0_1] : memref<31xf32, #tpu.memory_space<smem>>
    %c10 = arith.constant 10 : index
    %3 = memref.load %arg1[%c10] : memref<31xf32, #tpu.memory_space<smem>>
    %c20 = arith.constant 20 : index
    %4 = memref.load %arg1[%c20] : memref<31xf32, #tpu.memory_space<smem>>
    %5 = vector.broadcast %2 : f32 to vector<1x128xf32>
    %6 = arith.mulf %5, %0 : vector<1x128xf32>
    %7 = vector.broadcast %3 : f32 to vector<1x128xf32>
    %8 = arith.addf %6, %7 : vector<1x128xf32>
    %cst_2 = arith.constant 0.000000e+00 : f32
    %9 = vector.broadcast %cst_2 : f32 to vector<1x128xf32>
    %10 = arith.maximumf %8, %9 : vector<1x128xf32>
    %11 = vector.broadcast %4 : f32 to vector<1x128xf32>
    %12 = arith.mulf %11, %10 : vector<1x128xf32>
    %13 = arith.addf %1, %12 : vector<1x128xf32>
    %c1 = arith.constant 1 : index
    %14 = memref.load %arg1[%c1] : memref<31xf32, #tpu.memory_space<smem>>
    %c11 = arith.constant 11 : index
    %15 = memref.load %arg1[%c11] : memref<31xf32, #tpu.memory_space<smem>>
    %c21 = arith.constant 21 : index
    %16 = memref.load %arg1[%c21] : memref<31xf32, #tpu.memory_space<smem>>
    %17 = vector.broadcast %14 : f32 to vector<1x128xf32>
    %18 = arith.mulf %17, %0 : vector<1x128xf32>
    %19 = vector.broadcast %15 : f32 to vector<1x128xf32>
    %20 = arith.addf %18, %19 : vector<1x128xf32>
    %cst_3 = arith.constant 0.000000e+00 : f32
    %21 = vector.broadcast %cst_3 : f32 to vector<1x128xf32>
    %22 = arith.maximumf %20, %21 : vector<1x128xf32>
    %23 = vector.broadcast %16 : f32 to vector<1x128xf32>
    %24 = arith.mulf %23, %22 : vector<1x128xf32>
    %25 = arith.addf %13, %24 : vector<1x128xf32>
    %c2 = arith.constant 2 : index
    %26 = memref.load %arg1[%c2] : memref<31xf32, #tpu.memory_space<smem>>
    %c12 = arith.constant 12 : index
    %27 = memref.load %arg1[%c12] : memref<31xf32, #tpu.memory_space<smem>>
    %c22 = arith.constant 22 : index
    %28 = memref.load %arg1[%c22] : memref<31xf32, #tpu.memory_space<smem>>
    %29 = vector.broadcast %26 : f32 to vector<1x128xf32>
    %30 = arith.mulf %29, %0 : vector<1x128xf32>
    %31 = vector.broadcast %27 : f32 to vector<1x128xf32>
    %32 = arith.addf %30, %31 : vector<1x128xf32>
    %cst_4 = arith.constant 0.000000e+00 : f32
    %33 = vector.broadcast %cst_4 : f32 to vector<1x128xf32>
    %34 = arith.maximumf %32, %33 : vector<1x128xf32>
    %35 = vector.broadcast %28 : f32 to vector<1x128xf32>
    %36 = arith.mulf %35, %34 : vector<1x128xf32>
    %37 = arith.addf %25, %36 : vector<1x128xf32>
    %c3 = arith.constant 3 : index
    %38 = memref.load %arg1[%c3] : memref<31xf32, #tpu.memory_space<smem>>
    %c13 = arith.constant 13 : index
    %39 = memref.load %arg1[%c13] : memref<31xf32, #tpu.memory_space<smem>>
    %c23 = arith.constant 23 : index
    %40 = memref.load %arg1[%c23] : memref<31xf32, #tpu.memory_space<smem>>
    %41 = vector.broadcast %38 : f32 to vector<1x128xf32>
    %42 = arith.mulf %41, %0 : vector<1x128xf32>
    %43 = vector.broadcast %39 : f32 to vector<1x128xf32>
    %44 = arith.addf %42, %43 : vector<1x128xf32>
    %cst_5 = arith.constant 0.000000e+00 : f32
    %45 = vector.broadcast %cst_5 : f32 to vector<1x128xf32>
    %46 = arith.maximumf %44, %45 : vector<1x128xf32>
    %47 = vector.broadcast %40 : f32 to vector<1x128xf32>
    %48 = arith.mulf %47, %46 : vector<1x128xf32>
    %49 = arith.addf %37, %48 : vector<1x128xf32>
    %c4 = arith.constant 4 : index
    %50 = memref.load %arg1[%c4] : memref<31xf32, #tpu.memory_space<smem>>
    %c14 = arith.constant 14 : index
    %51 = memref.load %arg1[%c14] : memref<31xf32, #tpu.memory_space<smem>>
    %c24 = arith.constant 24 : index
    %52 = memref.load %arg1[%c24] : memref<31xf32, #tpu.memory_space<smem>>
    %53 = vector.broadcast %50 : f32 to vector<1x128xf32>
    %54 = arith.mulf %53, %0 : vector<1x128xf32>
    %55 = vector.broadcast %51 : f32 to vector<1x128xf32>
    %56 = arith.addf %54, %55 : vector<1x128xf32>
    %cst_6 = arith.constant 0.000000e+00 : f32
    %57 = vector.broadcast %cst_6 : f32 to vector<1x128xf32>
    %58 = arith.maximumf %56, %57 : vector<1x128xf32>
    %59 = vector.broadcast %52 : f32 to vector<1x128xf32>
    %60 = arith.mulf %59, %58 : vector<1x128xf32>
    %61 = arith.addf %49, %60 : vector<1x128xf32>
    %c5 = arith.constant 5 : index
    %62 = memref.load %arg1[%c5] : memref<31xf32, #tpu.memory_space<smem>>
    %c15 = arith.constant 15 : index
    %63 = memref.load %arg1[%c15] : memref<31xf32, #tpu.memory_space<smem>>
    %c25 = arith.constant 25 : index
    %64 = memref.load %arg1[%c25] : memref<31xf32, #tpu.memory_space<smem>>
    %65 = vector.broadcast %62 : f32 to vector<1x128xf32>
    %66 = arith.mulf %65, %0 : vector<1x128xf32>
    %67 = vector.broadcast %63 : f32 to vector<1x128xf32>
    %68 = arith.addf %66, %67 : vector<1x128xf32>
    %cst_7 = arith.constant 0.000000e+00 : f32
    %69 = vector.broadcast %cst_7 : f32 to vector<1x128xf32>
    %70 = arith.maximumf %68, %69 : vector<1x128xf32>
    %71 = vector.broadcast %64 : f32 to vector<1x128xf32>
    %72 = arith.mulf %71, %70 : vector<1x128xf32>
    %73 = arith.addf %61, %72 : vector<1x128xf32>
    %c6 = arith.constant 6 : index
    %74 = memref.load %arg1[%c6] : memref<31xf32, #tpu.memory_space<smem>>
    %c16 = arith.constant 16 : index
    %75 = memref.load %arg1[%c16] : memref<31xf32, #tpu.memory_space<smem>>
    %c26 = arith.constant 26 : index
    %76 = memref.load %arg1[%c26] : memref<31xf32, #tpu.memory_space<smem>>
    %77 = vector.broadcast %74 : f32 to vector<1x128xf32>
    %78 = arith.mulf %77, %0 : vector<1x128xf32>
    %79 = vector.broadcast %75 : f32 to vector<1x128xf32>
    %80 = arith.addf %78, %79 : vector<1x128xf32>
    %cst_8 = arith.constant 0.000000e+00 : f32
    %81 = vector.broadcast %cst_8 : f32 to vector<1x128xf32>
    %82 = arith.maximumf %80, %81 : vector<1x128xf32>
    %83 = vector.broadcast %76 : f32 to vector<1x128xf32>
    %84 = arith.mulf %83, %82 : vector<1x128xf32>
    %85 = arith.addf %73, %84 : vector<1x128xf32>
    %c7 = arith.constant 7 : index
    %86 = memref.load %arg1[%c7] : memref<31xf32, #tpu.memory_space<smem>>
    %c17 = arith.constant 17 : index
    %87 = memref.load %arg1[%c17] : memref<31xf32, #tpu.memory_space<smem>>
    %c27 = arith.constant 27 : index
    %88 = memref.load %arg1[%c27] : memref<31xf32, #tpu.memory_space<smem>>
    %89 = vector.broadcast %86 : f32 to vector<1x128xf32>
    %90 = arith.mulf %89, %0 : vector<1x128xf32>
    %91 = vector.broadcast %87 : f32 to vector<1x128xf32>
    %92 = arith.addf %90, %91 : vector<1x128xf32>
    %cst_9 = arith.constant 0.000000e+00 : f32
    %93 = vector.broadcast %cst_9 : f32 to vector<1x128xf32>
    %94 = arith.maximumf %92, %93 : vector<1x128xf32>
    %95 = vector.broadcast %88 : f32 to vector<1x128xf32>
    %96 = arith.mulf %95, %94 : vector<1x128xf32>
    %97 = arith.addf %85, %96 : vector<1x128xf32>
    %c8 = arith.constant 8 : index
    %98 = memref.load %arg1[%c8] : memref<31xf32, #tpu.memory_space<smem>>
    %c18 = arith.constant 18 : index
    %99 = memref.load %arg1[%c18] : memref<31xf32, #tpu.memory_space<smem>>
    %c28 = arith.constant 28 : index
    %100 = memref.load %arg1[%c28] : memref<31xf32, #tpu.memory_space<smem>>
    %101 = vector.broadcast %98 : f32 to vector<1x128xf32>
    %102 = arith.mulf %101, %0 : vector<1x128xf32>
    %103 = vector.broadcast %99 : f32 to vector<1x128xf32>
    %104 = arith.addf %102, %103 : vector<1x128xf32>
    %cst_10 = arith.constant 0.000000e+00 : f32
    %105 = vector.broadcast %cst_10 : f32 to vector<1x128xf32>
    %106 = arith.maximumf %104, %105 : vector<1x128xf32>
    %107 = vector.broadcast %100 : f32 to vector<1x128xf32>
    %108 = arith.mulf %107, %106 : vector<1x128xf32>
    %109 = arith.addf %97, %108 : vector<1x128xf32>
    %c9 = arith.constant 9 : index
    %110 = memref.load %arg1[%c9] : memref<31xf32, #tpu.memory_space<smem>>
    %c19 = arith.constant 19 : index
    %111 = memref.load %arg1[%c19] : memref<31xf32, #tpu.memory_space<smem>>
    %c29 = arith.constant 29 : index
    %112 = memref.load %arg1[%c29] : memref<31xf32, #tpu.memory_space<smem>>
    %113 = vector.broadcast %110 : f32 to vector<1x128xf32>
    %114 = arith.mulf %113, %0 : vector<1x128xf32>
    %115 = vector.broadcast %111 : f32 to vector<1x128xf32>
    %116 = arith.addf %114, %115 : vector<1x128xf32>
    %cst_11 = arith.constant 0.000000e+00 : f32
    %117 = vector.broadcast %cst_11 : f32 to vector<1x128xf32>
    %118 = arith.maximumf %116, %117 : vector<1x128xf32>
    %119 = vector.broadcast %112 : f32 to vector<1x128xf32>
    %120 = arith.mulf %119, %118 : vector<1x128xf32>
    %121 = arith.addf %109, %120 : vector<1x128xf32>
    %c30 = arith.constant 30 : index
    %122 = memref.load %arg1[%c30] : memref<31xf32, #tpu.memory_space<smem>>
    %123 = vector.broadcast %122 : f32 to vector<1x128xf32>
    %124 = arith.addf %121, %123 : vector<1x128xf32>
    %c0_12 = arith.constant 0 : index
    %c0_13 = arith.constant 0 : index
    %125 = vector.load %arg2[%c0_12, %c0_13] : memref<1x128xf32, #tpu.memory_space<vmem>>, vector<1x128xf32>
    tpu.vector_store %arg2[%c0_12, %c0_13], %124 {strides = array<i32>} : memref<1x128xf32, #tpu.memory_space<vmem>>, vector<1x128xf32>,
    return
  }
}

</mosaic_0001>

<llo_original>
// kernel: tpu_custom_call.1
$region0: #{tpu_custom_call.1}
  #allocation0 [shape = 'u32[]', space=smem, size = 0x4, offset = 0x4, fixed_abs, tag = 'smem constant byte address 0x4 - core index']
  #allocation1 [shape = 'u32[144,128]{1,0:T(1,128)}', space=vmem, size = 0x12000, scoped, tag = 'internal scratch']
  %s0 = inlined_call_operand.hbm [shape: f32[1,128], index: 0, kind: input, shape index: {}]
  %s1 = inlined_call_operand.vmem [shape: f32[31], index: 1, kind: input, shape index: {}]
  %s2 = inlined_call_operand.hbm [shape: f32[1,128], index: 2, kind: output, shape index: {}]
  %s3 = sld [smem:[#allocation0]]
  $region26: #{tpu_custom_call.1} parent=0
    _
  %s5 = ssub.s32 1, %s3
  %s6 = scalar_select 0, %s5, %s3
  $region1: #{tpu_custom_call.1} parent=0
    #allocation2 [shape = 'u8[512]{0}', space=vmem, size = 0x400, scoped, tag = 'input window, operand 0, single buffered']
    #allocation3 [shape = 's32[1]{0}', space=sflag, size = 0x4, scoped, tag = 'scoped memory for tpu_custom_call.1']
    #allocation4 [shape = 's32[1]{0}', space=sflag, size = 0x4, scoped, tag = 'scoped memory for tpu_custom_call.1']
    #allocation5 [shape = 's32[1]{0}', space=sflag, size = 0x4, scoped, tag = 'scoped memory for tpu_custom_call.1']
    #allocation6 [shape = 'u8[512]{0}', space=smem, size = 0x200, scoped, tag = 'input window, operand 1, single buffered']
    #allocation7 [shape = 'u8[512]{0}', space=vmem, size = 0x400, scoped, tag = 'output window, operand 0, single buffered']
    %7 = vsyncpa [#allocation3], 0
    %8 = vsyncpa [#allocation5], 0
    %9 = vsyncpa [#allocation4], 0
    // Predicated region
    $region2: #{tpu_custom_call.1} parent=1 // pred_check
      _
    $region3: #{tpu_custom_call.1} parent=1 // pred_check_branch
      %11 = sbr.rel (0) target = $region5
    $region4: #{tpu_custom_call.1} parent=1 // pred_region
      %s13 = ssub.s32 16, 16
      %14 = vsyncadd [#allocation3], %s13
      %s16 = sshll.u32 [#allocation2], 4
      %s17 = int_to_ptr.vmem [resolvable:$true] %s16
      %19 = dma.hbm_to_vmem [thread:$0]  %s0, 16, %s17, [#allocation3]
    $region5: #{tpu_custom_call.1} parent=1 // pred_fallthru
      _
    // Predicated region
    $region6: #{tpu_custom_call.1} parent=1 // pred_check
      _
    $region7: #{tpu_custom_call.1} parent=1 // pred_check_branch
      %21 = sbr.rel (0) target = $region9
    $region8: #{tpu_custom_call.1} parent=1 // pred_region
      %s23 = ssub.s32 16, 16
      %24 = vsyncadd [#allocation5], %s23
      %s26 = sshll.u32 %s1, 4
      %s27 = int_to_ptr.vmem [resolvable:$true] %s26
      %29 = dma.vmem_to_smem %s27, 16, [#allocation6], [#allocation5]
    $region9: #{tpu_custom_call.1} parent=1 // pred_fallthru
      _
    // Predicated region
    $region10: #{tpu_custom_call.1} parent=1 // pred_check
      _
    $region11: #{tpu_custom_call.1} parent=1 // pred_check_branch
      %31 = sbr.rel (0) target = $region13
    $region12: #{tpu_custom_call.1} parent=1 // pred_region
      %32 = dma.done [#allocation3], 16
    $region13: #{tpu_custom_call.1} parent=1 // pred_fallthru
      _
    // Predicated region
    $region14: #{tpu_custom_call.1} parent=1 // pred_check
      _
    $region15: #{tpu_custom_call.1} parent=1 // pred_check_branch
      %34 = sbr.rel (0) target = $region17
    $region16: #{tpu_custom_call.1} parent=1 // pred_region
      %35 = dma.done [#allocation5], 16
    $region17: #{tpu_custom_call.1} parent=1 // pred_fallthru
      _
    %36 = sfence
    %v37 = vld [vmem:[#allocation2] sm:$0x1]
    %s38 = sld [smem:[#allocation6]]
    %s39 = sld [smem:[#allocation6 + $0xa]]
    %s40 = sld [smem:[#allocation6 + $0x14]]
    %v41 = vstv %s38
    %v42 = vmul.f32 %v41, %v37
    %v43 = vstv %s39
    %v44 = vadd.f32 %v42, %v43
    %v45 = vmax.f32 %v44, 0.0
    %v46 = vstv %s40
    %v47 = vmul.f32 %v46, %v45
    %v48 = vadd.f32 %v47, 0.0
    %s49 = sld [smem:[#allocation6 + $0x1]]
    %s50 = sld [smem:[#allocation6 + $0xb]]
    %s51 = sld [smem:[#allocation6 + $0x15]]
    %v52 = vstv %s49
    %v53 = vmul.f32 %v52, %v37
    %v54 = vstv %s50
    %v55 = vadd.f32 %v53, %v54
    %v56 = vmax.f32 %v55, 0.0
    %v57 = vstv %s51
    %v58 = vmul.f32 %v57, %v56
    %v59 = vadd.f32 %v48, %v58
    %s60 = sld [smem:[#allocation6 + $0x2]]
    %s61 = sld [smem:[#allocation6 + $0xc]]
    %s62 = sld [smem:[#allocation6 + $0x16]]
    %v63 = vstv %s60
    %v64 = vmul.f32 %v63, %v37
    %v65 = vstv %s61
    %v66 = vadd.f32 %v64, %v65
    %v67 = vmax.f32 %v66, 0.0
    %v68 = vstv %s62
    %v69 = vmul.f32 %v68, %v67
    %v70 = vadd.f32 %v59, %v69
    %s71 = sld [smem:[#allocation6 + $0x3]]
    %s72 = sld [smem:[#allocation6 + $0xd]]
    %s73 = sld [smem:[#allocation6 + $0x17]]
    %v74 = vstv %s71
    %v75 = vmul.f32 %v74, %v37
    %v76 = vstv %s72
    %v77 = vadd.f32 %v75, %v76
    %v78 = vmax.f32 %v77, 0.0
    %v79 = vstv %s73
    %v80 = vmul.f32 %v79, %v78
    %v81 = vadd.f32 %v70, %v80
    %s82 = sld [smem:[#allocation6 + $0x4]]
    %s83 = sld [smem:[#allocation6 + $0xe]]
    %s84 = sld [smem:[#allocation6 + $0x18]]
    %v85 = vstv %s82
    %v86 = vmul.f32 %v85, %v37
    %v87 = vstv %s83
    %v88 = vadd.f32 %v86, %v87
    %v89 = vmax.f32 %v88, 0.0
    %v90 = vstv %s84
    %v91 = vmul.f32 %v90, %v89
    %v92 = vadd.f32 %v81, %v91
    %s93 = sld [smem:[#allocation6 + $0x5]]
    %s94 = sld [smem:[#allocation6 + $0xf]]
    %s95 = sld [smem:[#allocation6 + $0x19]]
    %v96 = vstv %s93
    %v97 = vmul.f32 %v96, %v37
    %v98 = vstv %s94
    %v99 = vadd.f32 %v97, %v98
    %v100 = vmax.f32 %v99, 0.0
    %v101 = vstv %s95
    %v102 = vmul.f32 %v101, %v100
    %v103 = vadd.f32 %v92, %v102
    %s104 = sld [smem:[#allocation6 + $0x6]]
    %s105 = sld [smem:[#allocation6 + $0x10]]
    %s106 = sld [smem:[#allocation6 + $0x1a]]
    %v107 = vstv %s104
    %v108 = vmul.f32 %v107, %v37
    %v109 = vstv %s105
    %v110 = vadd.f32 %v108, %v109
    %v111 = vmax.f32 %v110, 0.0
    %v112 = vstv %s106
    %v113 = vmul.f32 %v112, %v111
    %v114 = vadd.f32 %v103, %v113
    %s115 = sld [smem:[#allocation6 + $0x7]]
    %s116 = sld [smem:[#allocation6 + $0x11]]
    %s117 = sld [smem:[#allocation6 + $0x1b]]
    %v118 = vstv %s115
    %v119 = vmul.f32 %v118, %v37
    %v120 = vstv %s116
    %v121 = vadd.f32 %v119, %v120
    %v122 = vmax.f32 %v121, 0.0
    %v123 = vstv %s117
    %v124 = vmul.f32 %v123, %v122
    %v125 = vadd.f32 %v114, %v124
    %s126 = sld [smem:[#allocation6 + $0x8]]
    %s127 = sld [smem:[#allocation6 + $0x12]]
    %s128 = sld [smem:[#allocation6 + $0x1c]]
    %v129 = vstv %s126
    %v130 = vmul.f32 %v129, %v37
    %v131 = vstv %s127
    %v132 = vadd.f32 %v130, %v131
    %v133 = vmax.f32 %v132, 0.0
    %v134 = vstv %s128
    %v135 = vmul.f32 %v134, %v133
    %v136 = vadd.f32 %v125, %v135
    %s137 = sld [smem:[#allocation6 + $0x9]]
    %s138 = sld [smem:[#allocation6 + $0x13]]
    %s139 = sld [smem:[#allocation6 + $0x1d]]
    %v140 = vstv %s137
    %v141 = vmul.f32 %v140, %v37
    %v142 = vstv %s138
    %v143 = vadd.f32 %v141, %v142
    %v144 = vmax.f32 %v143, 0.0
    %v145 = vstv %s139
    %v146 = vmul.f32 %v145, %v144
    %v147 = vadd.f32 %v136, %v146
    %s148 = sld [smem:[#allocation6 + $0x1e]]
    %v149 = vstv %s148
    %v150 = vadd.f32 %v147, %v149
    %151 = vst [vmem:[#allocation7] sm:$0x1] %v150
    // Predicated region
    $region18: #{tpu_custom_call.1} parent=1 // pred_check
      _
    $region19: #{tpu_custom_call.1} parent=1 // pred_check_branch
      %153 = sbr.rel (0) target = $region21
    $region20: #{tpu_custom_call.1} parent=1 // pred_region
      %s155 = ssub.s32 16, 16
      %156 = vsyncadd [#allocation4], %s155
      %s158 = sshll.u32 [#allocation7], 4
      %s159 = int_to_ptr.vmem [resolvable:$true] %s158
      %161 = dma.vmem_to_hbm [thread:$0]  %s159, 16, %s2, [#allocation4]
    $region21: #{tpu_custom_call.1} parent=1 // pred_fallthru
      _
    // Predicated region
    $region22: #{tpu_custom_call.1} parent=1 // pred_check
      _
    $region23: #{tpu_custom_call.1} parent=1 // pred_check_branch
      %163 = sbr.rel (0) target = $region25
    $region24: #{tpu_custom_call.1} parent=1 // pred_region
      %164 = dma.done [#allocation4], 16
    $region25: #{tpu_custom_call.1} parent=1 // pred_fallthru
      _
    %165 = vsyncpa [#allocation3], 1
    %166 = vsyncpa [#allocation4], 1
    %167 = vsyncpa [#allocation5], 1

</llo_original>
